<compile_context>
chip_gen: v6e
topology: v6e:2x2x1
jax: 0.10.0
libtpu: 0.0.40
codegen_flags: <defaults>
</compile_context>

<pallas_src>
import math

import jax
import jax.numpy as jnp
from jax import lax
from jax.experimental import pallas as pl
from jax.experimental.pallas import tpu as pltpu


def _gelu_tanh(x):
    # Matches torch.nn.functional.gelu(x, approximate='tanh'); computed in f32.
    c = math.sqrt(2.0 / math.pi)
    return 0.5 * x * (1.0 + jnp.tanh(c * (x + 0.044715 * x * x * x)))


# --------------------------------------------------------------------------------------
# Kernel
# --------------------------------------------------------------------------------------
def gemma_mlp_kernel(x_ref, gu_ref, down_ref, o_ref, acc_ref):
    # x_ref:    (tm, H)       token tile, already in the weight dtype
    # gu_ref:   (2, tI, H)    stacked [gate_w; up_w] tile (PyTorch (out, in) layout)
    # down_ref: (tI, H)       down_proj weight, pre-transposed to (in=I, out=H)
    # o_ref:    (tm, H)
    # acc_ref:  (tm, H) f32   accumulator, persists across the k (intermediate) axis
    k = pl.program_id(1)
    nk = pl.num_programs(1)

    @pl.when(k == 0)
    def _():
        acc_ref[...] = jnp.zeros_like(acc_ref)

    x = x_ref[...]

    # x @ W.T (F.linear semantics): contract the last dims of both operands.
    # This is the same contraction form as the flash-attention q @ k^T einsum, which
    # Mosaic lowers directly to the MXU (no per-step XLU transpose of the weight tile).
    dn_t = (((1,), (1,)), ((), ()))
    gate = lax.dot_general(x, gu_ref[0], dn_t, preferred_element_type=jnp.float32)
    up = lax.dot_general(x, gu_ref[1], dn_t, preferred_element_type=jnp.float32)

    # GELU(tanh) + gating in f32 on the VPU/EUP.
    fuse = _gelu_tanh(gate) * up

    # Canonical [M,K]x[K,N] down projection (weight pre-transposed, contiguous tile).
    dn = (((1,), (0,)), ((), ()))
    partial = lax.dot_general(fuse.astype(down_ref.dtype), down_ref[...], dn,
                              preferred_element_type=jnp.float32)

    is_last = k == nk - 1

    @pl.when(k < nk - 1)
    def _():
        acc_ref[...] += partial

    @pl.when(is_last)
    def _():
        # Fuse the last partial into the output write: avoids an extra (tm, H) f32
        # accumulator store + reload per token tile.
        o_ref[...] = (acc_ref[...] + partial).astype(o_ref.dtype)


# --------------------------------------------------------------------------------------
# Host-side helpers
# --------------------------------------------------------------------------------------
def _round_up(x, m):
    return ((x + m - 1) // m) * m


def _vmem_capacity_bytes():
    try:
        cap = getattr(pltpu.get_tpu_info(), "vmem_capacity_bytes", None)
        if cap:
            return int(cap)
    except Exception:
        pass
    return 64 << 20  # conservative (v7x-sized) fallback


def _vmem_need_bytes(tm, tI, H, x_bytes, w_bytes):
    dbl = 2 * (tm * H * x_bytes          # x tile (double-buffered by the pipeline)
               + 2 * tI * H * w_bytes    # stacked gate+up weight tile
               + tI * H * w_bytes        # down weight tile
               + tm * H * x_bytes)       # output tile
    acc = tm * H * 4                     # f32 accumulator scratch
    temps = 3 * tm * tI * 4              # gate / up / fuse f32 temporaries
    return dbl + acc + temps + (8 << 20)  # Mosaic internal scratch headroom


def _inter_tile_candidates(I_pad, block_inter):
    if I_pad <= block_inter:
        return [I_pad]                    # single full-extent tile
    cands = []
    m = min(block_inter, I_pad) // 128
    while m >= 1:
        t = m * 128
        if I_pad % t == 0:
            cands.append(t)
        m -= 1
    return cands or [I_pad]


def _token_tile_candidates(tm0):
    base = [tm0, 1024, 768, 512, 384, 256, 192, 128, 64, 32, 16, 8]
    return sorted({t for t in base if 8 <= t <= tm0}, reverse=True)


def prepare_gemma_mlp_weights(gate_w, up_w, down_w, *, block_inter=1024):
    """One-time weight preparation (do this at model-load time, not per forward call).

    gate_w/up_w: [I, H]; down_w: [H, I]  (PyTorch (out_features, in_features) layout).
    Returns (gu_w [2, I_pad, H], down_wt [I_pad, H]).  The intermediate dim is
    zero-padded to a multiple of 128 when it has to be tiled (zero rows contribute
    exactly 0 to the output, since gelu(0)*0 = 0 and the padded down rows are 0).
    """
    I, H = gate_w.shape
    gu = jnp.stack([gate_w, up_w], axis=0)          # (2, I, H): one fused DMA per k
    down_wt = jnp.transpose(down_w)                 # (I, H): contiguous (tI, H) tiles
    if I > block_inter and I % 128 != 0:
        pad = _round_up(I, 128) - I
        gu = jnp.pad(gu, ((0, 0), (0, pad), (0, 0)))
        down_wt = jnp.pad(down_wt, ((0, pad), (0, 0)))
    return gu, down_wt


def gemma_mlp_prepared(x, gu_w, down_wt, *, block_tokens=None, block_inter=1024):
    """x: [..., H]; gu_w: [2, I_pad, H]; down_wt: [I_pad, H] from prepare_gemma_mlp_weights."""
    orig_shape = x.shape
    out_dtype = x.dtype
    H = orig_shape[-1]
    I_pad = gu_w.shape[1]
    w_dtype = gu_w.dtype

    x2d = x.reshape(-1, H)
    if x2d.dtype != w_dtype:
        # Cast once here instead of per k-step inside the kernel.
        x2d = x2d.astype(w_dtype)
    T = x2d.shape[0]

    vmem_cap = _vmem_capacity_bytes()
    if block_tokens is None:
        # Arithmetic intensity is ~tm FLOPs per streamed weight byte; go bigger where
        # VMEM allows (v5e/v6e: 128 MiB), smaller default on v7x (64 MiB).
        block_tokens = 768 if vmem_cap >= (100 << 20) else 512

    # --- token tile: keep grid[0] >= 2 when possible so both v7x TCs get work -------
    if T > block_tokens:
        tm0 = block_tokens
    elif T >= 16:
        tm0 = min(_round_up((T + 1) // 2, 8), block_tokens)
    else:
        tm0 = T                                   # tiny / decode: single full-extent tile

    # --- fit (tm, tI) into physical VMEM; prefer large tm, then large tI ------------
    x_bytes = jnp.dtype(w_dtype).itemsize
    w_bytes = jnp.dtype(w_dtype).itemsize
    budget = vmem_cap - (4 << 20)
    tI_cands = _inter_tile_candidates(I_pad, block_inter)
    tm_cands = [tm0] if (tm0 <= 8 or tm0 == T) else _token_tile_candidates(tm0)

    tm, tI = tm_cands[-1], tI_cands[-1]
    found = False
    for tm_c in tm_cands:
        for tI_c in tI_cands:
            if _vmem_need_bytes(tm_c, tI_c, H, x_bytes, w_bytes) <= budget:
                tm, tI = tm_c, tI_c
                found = True
                break
        if found:
            break

    grid = (pl.cdiv(T, tm), I_pad // tI)

    need = _vmem_need_bytes(tm, tI, H, x_bytes, w_bytes)
    # Clamp to the device's physical VMEM (a 128 MiB request is invalid on v7x).
    vmem_limit = int(min(vmem_cap, max(need, 32 << 20)))

    out_bytes = jnp.dtype(out_dtype).itemsize
    cost = pl.CostEstimate(
        flops=6 * T * H * I_pad,                       # three T x H x I matmuls
        transcendentals=T * I_pad,                     # tanh in the GELU
        bytes_accessed=int(T * H * (x_bytes + out_bytes)
                           + 3 * I_pad * H * w_bytes * grid[0]),
    )

    out = pl.pallas_call(
        gemma_mlp_kernel,
        out_shape=jax.ShapeDtypeStruct((T, H), out_dtype),
        grid_spec=pltpu.PrefetchScalarGridSpec(
            num_scalar_prefetch=0,
            grid=grid,
            in_specs=[
                pl.BlockSpec((tm, H), lambda i, k: (i, 0)),        # x tile (reused over k)
                pl.BlockSpec((2, tI, H), lambda i, k: (0, k, 0)),  # stacked gate/up tile
                pl.BlockSpec((tI, H), lambda i, k: (k, 0)),        # contiguous down tile
            ],
            out_specs=pl.BlockSpec((tm, H), lambda i, k: (i, 0)),
            scratch_shapes=[pltpu.VMEM((tm, H), jnp.float32)],
        ),
        compiler_params=pltpu.CompilerParams(
            dimension_semantics=("parallel", "arbitrary"),
            vmem_limit_bytes=vmem_limit,
        ),
        cost_estimate=cost,
    )(x2d, gu_w, down_wt)

    return out.reshape(orig_shape)


def gemma_mlp(x, gate_w, up_w, down_w, *, block_tokens=None, block_inter=1024):
    """Convenience wrapper: prepare weights + run the kernel.

    In a real deployment call prepare_gemma_mlp_weights() once at weight-load time and
    reuse (gu_w, down_wt) across forward calls; this wrapper re-preps for simplicity.
    """
    gu_w, down_wt = prepare_gemma_mlp_weights(gate_w, up_w, down_w,
                                              block_inter=block_inter)
    return gemma_mlp_prepared(x, gu_w, down_wt,
                              block_tokens=block_tokens, block_inter=block_inter)


def gemma_mlp_ref(x, gate_w, up_w, down_w):
    gate = _gelu_tanh(x @ gate_w.T)
    up = x @ up_w.T
    return (gate * up) @ down_w.T


# TODO(synk): quant=True path (int8 weight * per-row weight_scaler) not implemented;
# this kernel covers the dense quant=False configuration of the reference module.


if __name__ == "__main__":
    batch, seq, hidden, intermediate = 2, 8, 32, 64

    key = jax.random.PRNGKey(0)
    kx, kg, ku, kd = jax.random.split(key, 4)

    x = jax.random.normal(kx, (batch, seq, hidden), dtype=jnp.float32)
    # Deterministic synthetic weights (PyTorch (out_features, in_features) layout).
    gate_w = jax.random.normal(kg, (intermediate, hidden), dtype=jnp.float32) * 0.05
    up_w = jax.random.normal(ku, (intermediate, hidden), dtype=jnp.float32) * 0.05
    down_w = jax.random.normal(kd, (hidden, intermediate), dtype=jnp.float32) * 0.05

    ref = gemma_mlp_ref(x, gate_w, up_w, down_w)

    # f32 correctness check.
    out = jax.block_until_ready(gemma_mlp(x, gate_w, up_w, down_w))
    assert out.shape == (batch, seq, hidden)
    assert jnp.allclose(out, ref, atol=1e-3, rtol=1e-3), "f32 mismatch vs reference"

    # bf16 path (deployment numerics: bf16 MXU inputs, f32 accumulation).
    xb = x.astype(jnp.bfloat16)
    gb = gate_w.astype(jnp.bfloat16)
    ub = up_w.astype(jnp.bfloat16)
    db = down_w.astype(jnp.bfloat16)
    out_bf16 = jax.block_until_ready(gemma_mlp(xb, gb, ub, db))
    assert out_bf16.dtype == jnp.bfloat16
    assert jnp.allclose(out_bf16.astype(jnp.float32), ref, atol=3e-2, rtol=3e-2), \
        "bf16 mismatch vs reference"

    print("KERNEL_OK")
</pallas_src>

<mosaic_0001>
module attributes {stable_mosaic.version = 11 : i64} {
  func.func @gemma_mlp_kernel(%arg0: i32, %arg1: i32, %arg2: memref<8x32xf32, #tpu.memory_space<vmem>>, %arg3: memref<2x64x32xf32, #tpu.memory_space<vmem>>, %arg4: memref<64x32xf32, #tpu.memory_space<vmem>>, %arg5: memref<8x32xf32, #tpu.memory_space<vmem>>, %arg6: memref<8x32xf32, #tpu.memory_space<vmem>>) attributes {dimension_semantics = [#tpu.dimension_semantics<parallel>, #tpu.dimension_semantics<arbitrary>], iteration_bounds = array<i64: 2, 1>, scalar_prefetch = 0 : i64, scratch_operands = 1 : i64, tpu.core_type = #tpu.core_type<tc>, window_params = [{transform_indices = @transform_0, window_bounds = array<i64: 8, 32>}, {transform_indices = @transform_1, window_bounds = array<i64: 2, 64, 32>}, {transform_indices = @transform_2, window_bounds = array<i64: 64, 32>}, {transform_indices = @transform_3, window_bounds = array<i64: 8, 32>}]} {
    %c0_i32 = arith.constant 0 : i32
    %0 = arith.cmpi eq, %arg1, %c0_i32 : i32
    %1 = arith.extui %0 : i1 to i32
    %c0_i32_0 = arith.constant 0 : i32
    %2 = arith.cmpi ne, %1, %c0_i32_0 : i32
    scf.if %2 {
      %cst_19 = arith.constant 0.000000e+00 : f32
      %32 = vector.broadcast %cst_19 : f32 to vector<8x32xf32>
      %c0_20 = arith.constant 0 : index
      %c0_21 = arith.constant 0 : index
      %33 = vector.load %arg6[%c0_20, %c0_21] : memref<8x32xf32, #tpu.memory_space<vmem>>, vector<8x32xf32>
      tpu.vector_store %arg6[%c0_20, %c0_21], %32 {strides = array<i32>} : memref<8x32xf32, #tpu.memory_space<vmem>>, vector<8x32xf32>,
    } else {
    }
    %c0 = arith.constant 0 : index
    %c0_1 = arith.constant 0 : index
    %3 = vector.load %arg2[%c0, %c0_1] : memref<8x32xf32, #tpu.memory_space<vmem>>, vector<8x32xf32>
    %c0_2 = arith.constant 0 : index
    %c0_3 = arith.constant 0 : index
    %c0_4 = arith.constant 0 : index
    %4 = vector.load %arg3[%c0_2, %c0_3, %c0_4] : memref<2x64x32xf32, #tpu.memory_space<vmem>>, vector<1x64x32xf32>
    %5 = vector.shape_cast %4 : vector<1x64x32xf32> to vector<64x32xf32>
    %cst = arith.constant dense<0.000000e+00> : vector<8x64xf32>
    %6 = tpu.matmul %3, %5, %cst {dimension_numbers = #tpu.dot_dimension_numbers<[1], [1], [0], [0], [0, 0, 1, 0], [], []>} : vector<8x32xf32>, vector<64x32xf32>, vector<8x64xf32> -> vector<8x64xf32>
    %c1 = arith.constant 1 : index
    %c0_5 = arith.constant 0 : index
    %c0_6 = arith.constant 0 : index
    %7 = vector.load %arg3[%c1, %c0_5, %c0_6] : memref<2x64x32xf32, #tpu.memory_space<vmem>>, vector<1x64x32xf32>
    %8 = vector.shape_cast %7 : vector<1x64x32xf32> to vector<64x32xf32>
    %cst_7 = arith.constant dense<0.000000e+00> : vector<8x64xf32>
    %9 = tpu.matmul %3, %8, %cst_7 {dimension_numbers = #tpu.dot_dimension_numbers<[1], [1], [0], [0], [0, 0, 1, 0], [], []>} : vector<8x32xf32>, vector<64x32xf32>, vector<8x64xf32> -> vector<8x64xf32>
    %cst_8 = arith.constant 5.000000e-01 : f32
    %10 = vector.broadcast %cst_8 : f32 to vector<8x64xf32>
    %11 = arith.mulf %10, %6 : vector<8x64xf32>
    %cst_9 = arith.constant 4.471500e-02 : f32
    %12 = vector.broadcast %cst_9 : f32 to vector<8x64xf32>
    %13 = arith.mulf %12, %6 : vector<8x64xf32>
    %14 = arith.mulf %13, %6 : vector<8x64xf32>
    %15 = arith.mulf %14, %6 : vector<8x64xf32>
    %16 = arith.addf %6, %15 : vector<8x64xf32>
    %cst_10 = arith.constant 0.797884583 : f32
    %17 = vector.broadcast %cst_10 : f32 to vector<8x64xf32>
    %18 = arith.mulf %17, %16 : vector<8x64xf32>
    %19 = math.tanh %18 : vector<8x64xf32>
    %cst_11 = arith.constant 1.000000e+00 : f32
    %20 = vector.broadcast %cst_11 : f32 to vector<8x64xf32>
    %21 = arith.addf %20, %19 : vector<8x64xf32>
    %22 = arith.mulf %11, %21 : vector<8x64xf32>
    %23 = arith.mulf %22, %9 : vector<8x64xf32>
    %c0_12 = arith.constant 0 : index
    %c0_13 = arith.constant 0 : index
    %24 = vector.load %arg4[%c0_12, %c0_13] : memref<64x32xf32, #tpu.memory_space<vmem>>, vector<64x32xf32>
    %cst_14 = arith.constant dense<0.000000e+00> : vector<8x32xf32>
    %25 = tpu.matmul %23, %24, %cst_14 {dimension_numbers = #tpu.dot_dimension_numbers<[1], [0], [0], [1], [0, 0, 1, 1], [], []>} : vector<8x64xf32>, vector<64x32xf32>, vector<8x32xf32> -> vector<8x32xf32>
    %c0_i32_15 = arith.constant 0 : i32
    %26 = arith.cmpi eq, %arg1, %c0_i32_15 : i32
    %c0_i32_16 = arith.constant 0 : i32
    %27 = arith.cmpi slt, %arg1, %c0_i32_16 : i32
    %28 = arith.extui %27 : i1 to i32
    %c0_i32_17 = arith.constant 0 : i32
    %29 = arith.cmpi ne, %28, %c0_i32_17 : i32
    scf.if %29 {
      %c0_19 = arith.constant 0 : index
      %c0_20 = arith.constant 0 : index
      %32 = vector.load %arg6[%c0_19, %c0_20] : memref<8x32xf32, #tpu.memory_space<vmem>>, vector<8x32xf32>
      %33 = arith.addf %32, %25 : vector<8x32xf32>
      %c0_21 = arith.constant 0 : index
      %c0_22 = arith.constant 0 : index
      %34 = vector.load %arg6[%c0_21, %c0_22] : memref<8x32xf32, #tpu.memory_space<vmem>>, vector<8x32xf32>
      tpu.vector_store %arg6[%c0_21, %c0_22], %33 {strides = array<i32>} : memref<8x32xf32, #tpu.memory_space<vmem>>, vector<8x32xf32>,
    } else {
    }
    %30 = arith.extui %26 : i1 to i32
    %c0_i32_18 = arith.constant 0 : i32
    %31 = arith.cmpi ne, %30, %c0_i32_18 : i32
    scf.if %31 {
      %c0_19 = arith.constant 0 : index
      %c0_20 = arith.constant 0 : index
      %32 = vector.load %arg6[%c0_19, %c0_20] : memref<8x32xf32, #tpu.memory_space<vmem>>, vector<8x32xf32>
      %33 = arith.addf %32, %25 : vector<8x32xf32>
      %c0_21 = arith.constant 0 : index
      %c0_22 = arith.constant 0 : index
      %34 = vector.load %arg5[%c0_21, %c0_22] : memref<8x32xf32, #tpu.memory_space<vmem>>, vector<8x32xf32>
      tpu.vector_store %arg5[%c0_21, %c0_22], %33 {strides = array<i32>} : memref<8x32xf32, #tpu.memory_space<vmem>>, vector<8x32xf32>,
    } else {
    }
    return
  }
  func.func @transform_0(%arg0: i32, %arg1: i32) -> (i32, i32) {
    %c0_i32 = arith.constant 0 : i32
    %c0_i32_0 = arith.constant 0 : i32
    return %arg0, %c0_i32 : i32, i32
  }
  func.func @transform_1(%arg0: i32, %arg1: i32) -> (i32, i32, i32) {
    %c0_i32 = arith.constant 0 : i32
    %c0_i32_0 = arith.constant 0 : i32
    %c0_i32_1 = arith.constant 0 : i32
    return %c0_i32, %arg1, %c0_i32_0 : i32, i32, i32
  }
  func.func @transform_2(%arg0: i32, %arg1: i32) -> (i32, i32) {
    %c0_i32 = arith.constant 0 : i32
    %c0_i32_0 = arith.constant 0 : i32
    return %arg1, %c0_i32 : i32, i32
  }
  func.func @transform_3(%arg0: i32, %arg1: i32) -> (i32, i32) {
    %c0_i32 = arith.constant 0 : i32
    %c0_i32_0 = arith.constant 0 : i32
    return %arg0, %c0_i32 : i32, i32
  }
}

</mosaic_0001>

<llo_original>
// kernel: tpu_custom_call.1
$region0: #{tpu_custom_call.1}
  #allocation0 [shape = 'u32[]', space=smem, size = 0x4, offset = 0x4, fixed_abs, tag = 'smem constant byte address 0x4 - core index']
  #allocation1 [shape = 'u32[144,128]{1,0:T(1,128)}', space=vmem, size = 0x12000, scoped, tag = 'internal scratch']
  #allocation2 [shape = 'f32[8,32]{1,0:T(8,128)}', space=vmem, size = 0x1000, scoped, tag = 'scratch operand']
  %s0 = inlined_call_operand.vmem [shape: f32[16,32], index: 0, kind: input, shape index: {}]
  %s1 = inlined_call_operand.vmem [shape: f32[2,64,32], index: 1, kind: input, shape index: {}]
  %s2 = inlined_call_operand.vmem [shape: f32[64,32], index: 2, kind: input, shape index: {}]
  %s3 = inlined_call_operand.hbm [shape: f32[16,32], index: 3, kind: output, shape index: {}]
  %s4 = sld [smem:[#allocation0]]
  $region57: #{tpu_custom_call.1} parent=0
    _
  %s6 = ssub.s32 1, %s4
  %s7 = scalar_select 0, %s6, %s4
  $region1: #{tpu_custom_call.1} parent=0
    #allocation3 [shape = 'u8[8192]{0}', space=vmem, size = 0x2000, scoped, tag = 'output window, operand 0']
    #allocation4 [shape = 's32[2]{0}', space=sflag, size = 0x8, scoped, tag = 'scoped memory for tpu_custom_call.1']
    %8 = vsyncpa [#allocation4], 0
    %s9 = scalar_lea.sflag [#allocation4], 1
    %10 = vsyncpa %s9, 0
    loop: start=0, step=1, limit=4
    $region2: #{tpu_custom_call.1} parent=1 // loop_pre_header
      _
    $region3: #{tpu_custom_call.1} parent=1 // loop_header
      %s12 = sphi 0, %s16
      %p13 = scmp.ge.s32.totalorder %s12, 4
      %s19 = sphi 0, %s31
      %s20 = sphi 0, %s27
      %s21 = sphi 0, %s19
      %s22 = sphi 0, %s20
      %s23 = sphi 0, %s21
      %s24 = sphi 0, %s22
      %s34 = sphi 0, %s36
      %s37 = sphi 0, %s34
      %s38 = sphi 0, %s37
      %s54 = sphi 0, %s38
      %s60 = sphi 0, %s62
      %s63 = sphi 0, %s60
      %s64 = sphi 0, %s63
      %s80 = sphi 0, %s64
      %s86 = sphi 0, %s88
      %s89 = sphi 0, %s86
      %s90 = sphi 0, %s89
      %s106 = sphi 0, %s90
      %s112 = sphi 0, %s114
      %s115 = sphi 0, %s112
      %s116 = sphi 0, %s115
      %s132 = sphi 0, %s116
    $region4: #{tpu_custom_call.1} parent=1 // loop_header_branch
      %15 = sbr.rel (%p13) target = $region8
    $region5: #{tpu_custom_call.1} parent=1 // loop_body
      %s17 = ssub.s32 %s12, 1
      %s18 = ssub.s32 %s12, 2
      %s25 = sadd.s32 1, %s20
      %p26 = scmp.ge.s32.totalorder %s25, 1
      %s27 = scalar_select %p26, 0, %s25
      %s28 = sadd.s32 1, %s19
      %s29 = scalar_select %p26, %s28, %s19
      %p30 = scmp.ge.s32.totalorder %s29, 2
      %s31 = scalar_select %p30, 0, %s29
      %s32 = ssub.s32 %s19, %s31
      %p33 = scmp.eq.s32.totalorder %s32, 0
      %s35 = sadd.s32 %s34, 1
      %s36 = scalar_select %p33, %s34, %s35
      %p39 = pneg %p33
      %p40 = scmp.eq.s32.totalorder %s12, 1
      %p41 = por %p39, %p40
      %p42 = scmp.ne.s32.totalorder %s34, %s37
      %p43 = scmp.eq.s32.totalorder %s12, 0
      %p44 = por %p42, %p43
      %p45 = scmp.ne.s32.totalorder %s34, %s37
      %p46 = scmp.eq.s32.totalorder %s17, 1
      %p47 = por %p45, %p46
      %p48 = scmp.ne.s32.totalorder %s37, %s38
      %p49 = scmp.eq.s32.totalorder %s17, 0
      %p50 = por %p48, %p49
      %p51 = scmp.ne.s32.totalorder %s37, %s38
      %p52 = scmp.eq.s32.totalorder %s18, 1
      %p53 = por %p51, %p52
      %p55 = scmp.ne.s32.totalorder %s38, %s54
      %p56 = scmp.eq.s32.totalorder %s18, 0
      %p57 = por %p55, %p56
      %s58 = ssub.s32 %s20, %s27
      %p59 = scmp.eq.s32.totalorder %s58, 0
      %s61 = sadd.s32 %s60, 1
      %s62 = scalar_select %p59, %s60, %s61
      %p65 = pneg %p59
      %p66 = scmp.eq.s32.totalorder %s12, 1
      %p67 = por %p65, %p66
      %p68 = scmp.ne.s32.totalorder %s60, %s63
      %p69 = scmp.eq.s32.totalorder %s12, 0
      %p70 = por %p68, %p69
      %p71 = scmp.ne.s32.totalorder %s60, %s63
      %p72 = scmp.eq.s32.totalorder %s17, 1
      %p73 = por %p71, %p72
      %p74 = scmp.ne.s32.totalorder %s63, %s64
      %p75 = scmp.eq.s32.totalorder %s17, 0
      %p76 = por %p74, %p75
      %p77 = scmp.ne.s32.totalorder %s63, %s64
      %p78 = scmp.eq.s32.totalorder %s18, 1
      %p79 = por %p77, %p78
      %p81 = scmp.ne.s32.totalorder %s64, %s80
      %p82 = scmp.eq.s32.totalorder %s18, 0
      %p83 = por %p81, %p82
      %s84 = ssub.s32 %s20, %s27
      %p85 = scmp.eq.s32.totalorder %s84, 0
      %s87 = sadd.s32 %s86, 1
      %s88 = scalar_select %p85, %s86, %s87
      %p91 = pneg %p85
      %p92 = scmp.eq.s32.totalorder %s12, 1
      %p93 = por %p91, %p92
      %p94 = scmp.ne.s32.totalorder %s86, %s89
      %p95 = scmp.eq.s32.totalorder %s12, 0
      %p96 = por %p94, %p95
      %p97 = scmp.ne.s32.totalorder %s86, %s89
      %p98 = scmp.eq.s32.totalorder %s17, 1
      %p99 = por %p97, %p98
      %p100 = scmp.ne.s32.totalorder %s89, %s90
      %p101 = scmp.eq.s32.totalorder %s17, 0
      %p102 = por %p100, %p101
      %p103 = scmp.ne.s32.totalorder %s89, %s90
      %p104 = scmp.eq.s32.totalorder %s18, 1
      %p105 = por %p103, %p104
      %p107 = scmp.ne.s32.totalorder %s90, %s106
      %p108 = scmp.eq.s32.totalorder %s18, 0
      %p109 = por %p107, %p108
      %s110 = ssub.s32 %s19, %s31
      %p111 = scmp.eq.s32.totalorder %s110, 0
      %s113 = sadd.s32 %s112, 1
      %s114 = scalar_select %p111, %s112, %s113
      %p117 = pneg %p111
      %p118 = scmp.eq.s32.totalorder %s12, 1
      %p119 = por %p117, %p118
      %p120 = scmp.ne.s32.totalorder %s112, %s115
      %p121 = scmp.eq.s32.totalorder %s12, 0
      %p122 = por %p120, %p121
      %p123 = scmp.ne.s32.totalorder %s112, %s115
      %p124 = scmp.eq.s32.totalorder %s17, 1
      %p125 = por %p123, %p124
      %p126 = scmp.ne.s32.totalorder %s115, %s116
      %p127 = scmp.eq.s32.totalorder %s17, 0
      %p128 = por %p126, %p127
      %p129 = scmp.ne.s32.totalorder %s115, %s116
      %p130 = scmp.eq.s32.totalorder %s18, 1
      %p131 = por %p129, %p130
      %p133 = scmp.ne.s32.totalorder %s116, %s132
      %p134 = scmp.eq.s32.totalorder %s18, 0
      %p135 = por %p133, %p134
      %p136 = scmp.le.s32.totalorder 1, %s12
      %p137 = scmp.lt.s32.totalorder %s12, 3
      %p138 = pnand %p136, %p137
      %p139 = pneg %p138
      // Predicated region
      $region9: #{tpu_custom_call.1} parent=5 // pred_check
        _
      $region10: #{tpu_custom_call.1} parent=5 // pred_check_branch
        %141 = sbr.rel (%p138) target = $region12
      $region11: #{tpu_custom_call.1} parent=5 // pred_region
        %s142 = ssub.s32 %s12, 1
        // Predicated region
        $region13: #{tpu_custom_call.1} parent=11 // pred_check
          %p143 = pneg %p76
        $region14: #{tpu_custom_call.1} parent=11 // pred_check_branch
          %145 = sbr.rel (%p143) target = $region16
        $region15: #{tpu_custom_call.1} parent=11 // pred_region
          %s146 = smul.u32 8, %s22
          %p147 = scmp.lt.s32.totalorder %s146, 7
          %s148 = scalar_select %p147, %s146, 7
          %s149 = smul.addr %s148, 8
          %s150 = scalar_lea.vmem %s1, %s149
          %s151 = smul.u32 8, %s22
        $region16: #{tpu_custom_call.1} parent=11 // pred_fallthru
          _
        // Predicated region
        $region17: #{tpu_custom_call.1} parent=11 // pred_check
          %p152 = pneg %p102
        $region18: #{tpu_custom_call.1} parent=11 // pred_check_branch
          %154 = sbr.rel (%p152) target = $region20
        $region19: #{tpu_custom_call.1} parent=11 // pred_region
          %s155 = smul.u32 8, %s22
          %p156 = scmp.lt.s32.totalorder %s155, 7
          %s157 = scalar_select %p156, %s155, 7
          %s158 = smul.addr %s157, 8
          %s159 = scalar_lea.vmem %s2, %s158
          %s160 = smul.u32 8, %s22
        $region20: #{tpu_custom_call.1} parent=11 // pred_fallthru
          _
      $region12: #{tpu_custom_call.1} parent=5 // pred_fallthru
        _
      %p161 = scmp.lt.s32.totalorder %s12, 2
      // Predicated region
      $region21: #{tpu_custom_call.1} parent=5 // pred_check
        %p162 = pneg %p161
      $region22: #{tpu_custom_call.1} parent=5 // pred_check_branch
        %164 = sbr.rel (%p162) target = $region24
      $region23: #{tpu_custom_call.1} parent=5 // pred_region
        // Predicated region
        $region25: #{tpu_custom_call.1} parent=23 // pred_check
          %p165 = pneg %p44
        $region26: #{tpu_custom_call.1} parent=23 // pred_check_branch
          %167 = sbr.rel (%p165) target = $region28
        $region27: #{tpu_custom_call.1} parent=23 // pred_region
          %p168 = scmp.lt.s32.totalorder %s19, 1
          %s169 = scalar_select %p168, %s19, 1
          %s170 = smul.addr %s169, 8
          %s171 = scalar_lea.vmem %s0, %s170
        $region28: #{tpu_custom_call.1} parent=23 // pred_fallthru
          _
      $region24: #{tpu_custom_call.1} parent=5 // pred_fallthru
        _
      %p172 = scmp.le.s32.totalorder 1, %s12
      %p173 = scmp.lt.s32.totalorder %s12, 3
      %p174 = pnand %p172, %p173
      %p175 = pneg %p174
      // Predicated region
      $region29: #{tpu_custom_call.1} parent=5 // pred_check
        _
      $region30: #{tpu_custom_call.1} parent=5 // pred_check_branch
        %177 = sbr.rel (%p174) target = $region32
      $region31: #{tpu_custom_call.1} parent=5 // pred_region
        %s178 = ssub.s32 %s12, 1
        %p179 = scmp.lt.s32.totalorder %s21, 1
        %s180 = scalar_select %p179, %s21, 1
        %s181 = smul.addr %s180, 8
        %s182 = scalar_lea.vmem %s0, %s181
        %p183 = pneg %p50
        %p184 = pneg %p47
        %s185 = smul.u32 8, %s22
        %p186 = scmp.lt.s32.totalorder %s185, 7
        %s187 = scalar_select %p186, %s185, 7
        %s188 = smul.addr %s187, 8
        %s189 = scalar_lea.vmem %s1, %s188
        %p190 = pneg %p76
        %p191 = pneg %p73
        %s192 = smul.u32 8, %s22
        %p193 = scmp.lt.s32.totalorder %s192, 7
        %s194 = scalar_select %p193, %s192, 7
        %s195 = smul.addr %s194, 8
        %s196 = scalar_lea.vmem %s2, %s195
        %p197 = pneg %p102
        %p198 = pneg %p99
        %p199 = pneg %p128
        %p200 = pneg %p125
        %s201 = sand.u32 %s115, 1
        %s202 = scalar_lea.sflag [#allocation4], %s201
        %s203 = sand.u32 %s115, 1
        %s204 = smul.addr %s203, 8
        %s205 = scalar_lea.vmem [#allocation3], %s204
        %p206 = scmp.lt.s32.totalorder %s21, 1
        %s207 = scalar_select %p206, %s21, 1
        %s208 = smul.addr %s207, 8
        %s209 = scalar_lea.vmem %s0, %s208
        %s210 = smul.u32 8, %s22
        %p211 = scmp.lt.s32.totalorder %s210, 7
        %s212 = scalar_select %p211, %s210, 7
        %s213 = smul.addr %s212, 8
        %s214 = scalar_lea.vmem %s1, %s213
        %s215 = smul.u32 8, %s22
        %s216 = smul.u32 8, %s22
        %p217 = scmp.lt.s32.totalorder %s216, 7
        %s218 = scalar_select %p217, %s216, 7
        %s219 = smul.addr %s218, 8
        %s220 = scalar_lea.vmem %s2, %s219
        %s221 = smul.u32 8, %s22
        %p222 = scmp.eq.s32.totalorder %s22, 0
        // Predicated region
        $region33: #{tpu_custom_call.1} parent=31 // pred_check
          %p223 = pneg %p222
        $region34: #{tpu_custom_call.1} parent=31 // pred_check_branch
          %225 = sbr.rel (%p223) target = $region36
        $region35: #{tpu_custom_call.1} parent=31 // pred_region
          %vm226 = vcmask 261120
          %227 = vst.msk [vmem:[#allocation2] sm:$0xff] %vm226, 0.0
        $region36: #{tpu_custom_call.1} parent=31 // pred_fallthru
          _
        %v228 = vld [vmem:[%s209] sm:$0xff]
        %v229 = vld [vmem:[%s214] sm:$0xff]
        %v230 = vld [vmem:[%s214 + $0x8] sm:$0xff]
        %v231 = vld [vmem:[%s214 + $0x10] sm:$0xff]
        %v232 = vld [vmem:[%s214 + $0x18] sm:$0xff]
        %v233 = vld [vmem:[%s214 + $0x20] sm:$0xff]
        %v234 = vld [vmem:[%s214 + $0x28] sm:$0xff]
        %v235 = vld [vmem:[%s214 + $0x30] sm:$0xff]
        %v236 = vld [vmem:[%s214 + $0x38] sm:$0xff]
        %vm237 = vcmask 261120
        %v239 = vsel %vm237, %v228, 0
        %v242 = vsel %vm237, %v229, 0
        %v245 = vsel %vm237, %v230, 0
        %v248 = vsel %vm237, %v231, 0
        %v251 = vsel %vm237, %v232, 0
        %v254 = vsel %vm237, %v233, 0
        %v257 = vsel %vm237, %v234, 0
        %v260 = vsel %vm237, %v235, 0
        %v263 = vsel %vm237, %v236, 0
        %265 = vmatprep.subr.mxu0 0.0
        %266 = vmatpush1.xpose.msra.mxu0 0.0
        %267 = vmatprep.subr.mxu0 0.0
        %268 = vmatpush1.xpose.msra.mxu0 0.0
        %269 = vmatprep.subr.mxu0 0.0
        %270 = vmatpush1.xpose.msra.mxu0 0.0
        %271 = vmatprep.subr.mxu0 0.0
        %272 = vmatpush1.xpose.msra.mxu0 0.0
        %273 = vmatprep.subr.mxu0 0.0
        %274 = vmatpush1.xpose.msra.mxu0 0.0
        %275 = vmatprep.subr.mxu0 0.0
        %276 = vmatpush1.xpose.msra.mxu0 0.0
        %277 = vmatprep.subr.mxu0 0.0
        %278 = vmatpush1.xpose.msra.mxu0 0.0
        %279 = vmatprep.subr.mxu0 0.0
        %280 = vmatpush1.xpose.msra.mxu0 0.0
        %281 = vmatprep.subr.mxu0 0.0
        %282 = vmatpush1.xpose.msra.mxu0 %v263
        %283 = vmatprep.subr.mxu0 0.0
        %284 = vmatpush1.xpose.msra.mxu0 %v260
        %285 = vmatprep.subr.mxu0 0.0
        %286 = vmatpush1.xpose.msra.mxu0 %v257
        %287 = vmatprep.subr.mxu0 0.0
        %288 = vmatpush1.xpose.msra.mxu0 %v254
        %289 = vmatprep.subr.mxu0 0.0
        %290 = vmatpush1.xpose.msra.mxu0 %v251
        %291 = vmatprep.subr.mxu0 0.0
        %292 = vmatpush1.xpose.msra.mxu0 %v248
        %293 = vmatprep.subr.mxu0 0.0
        %294 = vmatpush1.xpose.msra.mxu0 %v245
        %295 = vmatprep.subr.mxu0 0.0
        %296 = vmatpush1.xpose.msra.mxu0 %v242
        %297 = vmatprep.subr.mxu0 0.0
        %298 = vmatpush2.xpose.msra.mxu0 0.0
        %299 = vmatprep.subr.mxu0 0.0
        %300 = vmatpush2.xpose.msra.mxu0 0.0
        %301 = vmatprep.subr.mxu0 0.0
        %302 = vmatpush2.xpose.msra.mxu0 0.0
        %303 = vmatprep.subr.mxu0 0.0
        %304 = vmatpush2.xpose.msra.mxu0 0.0
        %305 = vmatprep.subr.mxu0 0.0
        %306 = vmatpush2.xpose.msra.mxu0 0.0
        %307 = vmatprep.subr.mxu0 0.0
        %308 = vmatpush2.xpose.msra.mxu0 0.0
        %309 = vmatprep.subr.mxu0 0.0
        %310 = vmatpush2.xpose.msra.mxu0 0.0
        %311 = vmatprep.subr.mxu0 0.0
        %312 = vmatpush2.xpose.msra.mxu0 0.0
        %313 = vmatprep.subr.mxu0 0.0
        %314 = vmatpush2.xpose.msra.mxu0 0.0
        %315 = vmatprep.subr.mxu0 0.0
        %316 = vmatpush2.xpose.msra.mxu0 0.0
        %317 = vmatprep.subr.mxu0 0.0
        %318 = vmatpush2.xpose.msra.mxu0 0.0
        %319 = vmatprep.subr.mxu0 0.0
        %320 = vmatpush2.xpose.msra.mxu0 0.0
        %321 = vmatprep.subr.mxu0 0.0
        %322 = vmatpush2.xpose.msra.mxu0 0.0
        %323 = vmatprep.subr.mxu0 0.0
        %324 = vmatpush2.xpose.msra.mxu0 0.0
        %325 = vmatprep.subr.mxu0 0.0
        %326 = vmatpush2.xpose.msra.mxu0 0.0
        %327 = vmatprep.subr.mxu0 0.0
        %328 = vmatpush2.xpose.msra.mxu0 0.0
        %329 = vmatprep.mubr.f32.mxu0 0.0
        %330 = vmatmul.mubr.f32.gmra.mxu0 %v239
        %v331 = vpop.f32.mrf.mxu0
        %v332 = vadd.f32 0.0, %v331
        %v333 = vpop.f32.mrf.mxu0
        %334 = vdwg.mxu0
        %s335 = scalar_lea.vmem %s214, 64
        %v336 = vld [vmem:[%s335] sm:$0xff]
        %v337 = vld [vmem:[%s335 + $0x8] sm:$0xff]
        %v338 = vld [vmem:[%s335 + $0x10] sm:$0xff]
        %v339 = vld [vmem:[%s335 + $0x18] sm:$0xff]
        %v340 = vld [vmem:[%s335 + $0x20] sm:$0xff]
        %v341 = vld [vmem:[%s335 + $0x28] sm:$0xff]
        %v342 = vld [vmem:[%s335 + $0x30] sm:$0xff]
        %v343 = vld [vmem:[%s335 + $0x38] sm:$0xff]
        %v345 = vsel %vm237, %v336, 0
        %v348 = vsel %vm237, %v337, 0
        %v351 = vsel %vm237, %v338, 0
        %v354 = vsel %vm237, %v339, 0
        %v357 = vsel %vm237, %v340, 0
        %v360 = vsel %vm237, %v341, 0
        %v363 = vsel %vm237, %v342, 0
        %v366 = vsel %vm237, %v343, 0
        %368 = vmatprep.subr.mxu0 0.0
        %369 = vmatpush1.xpose.msra.mxu0 0.0
        %370 = vmatprep.subr.mxu0 0.0
        %371 = vmatpush1.xpose.msra.mxu0 0.0
        %372 = vmatprep.subr.mxu0 0.0
        %373 = vmatpush1.xpose.msra.mxu0 0.0
        %374 = vmatprep.subr.mxu0 0.0
        %375 = vmatpush1.xpose.msra.mxu0 0.0
        %376 = vmatprep.subr.mxu0 0.0
        %377 = vmatpush1.xpose.msra.mxu0 0.0
        %378 = vmatprep.subr.mxu0 0.0
        %379 = vmatpush1.xpose.msra.mxu0 0.0
        %380 = vmatprep.subr.mxu0 0.0
        %381 = vmatpush1.xpose.msra.mxu0 0.0
        %382 = vmatprep.subr.mxu0 0.0
        %383 = vmatpush1.xpose.msra.mxu0 0.0
        %384 = vmatprep.subr.mxu0 0.0
        %385 = vmatpush1.xpose.msra.mxu0 %v366
        %386 = vmatprep.subr.mxu0 0.0
        %387 = vmatpush1.xpose.msra.mxu0 %v363
        %388 = vmatprep.subr.mxu0 0.0
        %389 = vmatpush1.xpose.msra.mxu0 %v360
        %390 = vmatprep.subr.mxu0 0.0
        %391 = vmatpush1.xpose.msra.mxu0 %v357
        %392 = vmatprep.subr.mxu0 0.0
        %393 = vmatpush1.xpose.msra.mxu0 %v354
        %394 = vmatprep.subr.mxu0 0.0
        %395 = vmatpush1.xpose.msra.mxu0 %v351
        %396 = vmatprep.subr.mxu0 0.0
        %397 = vmatpush1.xpose.msra.mxu0 %v348
        %398 = vmatprep.subr.mxu0 0.0
        %399 = vmatpush1.xpose.msra.mxu0 %v345
        %400 = vmatprep.subr.mxu0 0.0
        %401 = vmatpush2.xpose.msra.mxu0 0.0
        %402 = vmatprep.subr.mxu0 0.0
        %403 = vmatpush2.xpose.msra.mxu0 0.0
        %404 = vmatprep.subr.mxu0 0.0
        %405 = vmatpush2.xpose.msra.mxu0 0.0
        %406 = vmatprep.subr.mxu0 0.0
        %407 = vmatpush2.xpose.msra.mxu0 0.0
        %408 = vmatprep.subr.mxu0 0.0
        %409 = vmatpush2.xpose.msra.mxu0 0.0
        %410 = vmatprep.subr.mxu0 0.0
        %411 = vmatpush2.xpose.msra.mxu0 0.0
        %412 = vmatprep.subr.mxu0 0.0
        %413 = vmatpush2.xpose.msra.mxu0 0.0
        %414 = vmatprep.subr.mxu0 0.0
        %415 = vmatpush2.xpose.msra.mxu0 0.0
        %416 = vmatprep.subr.mxu0 0.0
        %417 = vmatpush2.xpose.msra.mxu0 0.0
        %418 = vmatprep.subr.mxu0 0.0
        %419 = vmatpush2.xpose.msra.mxu0 0.0
        %420 = vmatprep.subr.mxu0 0.0
        %421 = vmatpush2.xpose.msra.mxu0 0.0
        %422 = vmatprep.subr.mxu0 0.0
        %423 = vmatpush2.xpose.msra.mxu0 0.0
        %424 = vmatprep.subr.mxu0 0.0
        %425 = vmatpush2.xpose.msra.mxu0 0.0
        %426 = vmatprep.subr.mxu0 0.0
        %427 = vmatpush2.xpose.msra.mxu0 0.0
        %428 = vmatprep.subr.mxu0 0.0
        %429 = vmatpush2.xpose.msra.mxu0 0.0
        %430 = vmatprep.subr.mxu0 0.0
        %431 = vmatpush2.xpose.msra.mxu0 0.0
        %432 = vmatprep.mubr.f32.mxu0 0.0
        %433 = vmatmul.mubr.f32.gmra.mxu0 %v239
        %v434 = vpop.f32.mrf.mxu0
        %v435 = vadd.f32 0.0, %v434
        %v436 = vpop.f32.mrf.mxu0
        %437 = vdwg.mxu0
        %v438 = vmul.f32 %v332, 0.5
        %v439 = vmul.f32 %v332, 0.044715
        %v440 = vmul.f32 %v439, %v332
        %v441 = vmul.f32 %v440, %v332
        %v442 = vadd.f32 %v332, %v441
        %v443 = vmul.f32 %v442, 0.7978846
        %v444 = vtanh.pop %v443
        %v445 = vadd.f32 %v444, 1.0
        %v446 = vmul.f32 %v438, %v445
        %v447 = vmul.f32 %v446, %v435
        %v448 = vld [vmem:[%s220] sm:$0xff]
        %v449 = vld [vmem:[%s220 + $0x8] sm:$0xff]
        %v450 = vld [vmem:[%s220 + $0x10] sm:$0xff]
        %v451 = vld [vmem:[%s220 + $0x18] sm:$0xff]
        %v452 = vld [vmem:[%s220 + $0x20] sm:$0xff]
        %v453 = vld [vmem:[%s220 + $0x28] sm:$0xff]
        %v454 = vld [vmem:[%s220 + $0x30] sm:$0xff]
        %v455 = vld [vmem:[%s220 + $0x38] sm:$0xff]
        %vm456 = vcmask 523264
        %v458 = vsel %vm456, %v447, 0
        %460 = vmatprep.subr.mxu0 0.0
        %461 = vmatpush1.msra.mxu0 0.0
        %462 = vmatprep.subr.mxu0 0.0
        %463 = vmatpush1.msra.mxu0 0.0
        %464 = vmatprep.subr.mxu0 0.0
        %465 = vmatpush1.msra.mxu0 0.0
        %466 = vmatprep.subr.mxu0 0.0
        %467 = vmatpush1.msra.mxu0 0.0
        %468 = vmatprep.subr.mxu0 0.0
        %469 = vmatpush1.msra.mxu0 0.0
        %470 = vmatprep.subr.mxu0 0.0
        %471 = vmatpush1.msra.mxu0 0.0
        %472 = vmatprep.subr.mxu0 0.0
        %473 = vmatpush1.msra.mxu0 0.0
        %474 = vmatprep.subr.mxu0 0.0
        %475 = vmatpush1.msra.mxu0 0.0
        %476 = vmatprep.subr.mxu0 0.0
        %477 = vmatpush1.msra.mxu0 %v455
        %478 = vmatprep.subr.mxu0 0.0
        %479 = vmatpush1.msra.mxu0 %v454
        %480 = vmatprep.subr.mxu0 0.0
        %481 = vmatpush1.msra.mxu0 %v453
        %482 = vmatprep.subr.mxu0 0.0
        %483 = vmatpush1.msra.mxu0 %v452
        %484 = vmatprep.subr.mxu0 0.0
        %485 = vmatpush1.msra.mxu0 %v451
        %486 = vmatprep.subr.mxu0 0.0
        %487 = vmatpush1.msra.mxu0 %v450
        %488 = vmatprep.subr.mxu0 0.0
        %489 = vmatpush1.msra.mxu0 %v449
        %490 = vmatprep.subr.mxu0 0.0
        %491 = vmatpush1.msra.mxu0 %v448
        %492 = vmatprep.subr.mxu0 0.0
        %493 = vmatpush2.msra.mxu0 0.0
        %494 = vmatprep.subr.mxu0 0.0
        %495 = vmatpush2.msra.mxu0 0.0
        %496 = vmatprep.subr.mxu0 0.0
        %497 = vmatpush2.msra.mxu0 0.0
        %498 = vmatprep.subr.mxu0 0.0
        %499 = vmatpush2.msra.mxu0 0.0
        %500 = vmatprep.subr.mxu0 0.0
        %501 = vmatpush2.msra.mxu0 0.0
        %502 = vmatprep.subr.mxu0 0.0
        %503 = vmatpush2.msra.mxu0 0.0
        %504 = vmatprep.subr.mxu0 0.0
        %505 = vmatpush2.msra.mxu0 0.0
        %506 = vmatprep.subr.mxu0 0.0
        %507 = vmatpush2.msra.mxu0 0.0
        %508 = vmatprep.subr.mxu0 0.0
        %509 = vmatpush2.msra.mxu0 0.0
        %510 = vmatprep.subr.mxu0 0.0
        %511 = vmatpush2.msra.mxu0 0.0
        %512 = vmatprep.subr.mxu0 0.0
        %513 = vmatpush2.msra.mxu0 0.0
        %514 = vmatprep.subr.mxu0 0.0
        %515 = vmatpush2.msra.mxu0 0.0
        %516 = vmatprep.subr.mxu0 0.0
        %517 = vmatpush2.msra.mxu0 0.0
        %518 = vmatprep.subr.mxu0 0.0
        %519 = vmatpush2.msra.mxu0 0.0
        %520 = vmatprep.subr.mxu0 0.0
        %521 = vmatpush2.msra.mxu0 0.0
        %522 = vmatprep.subr.mxu0 0.0
        %523 = vmatpush2.msra.mxu0 0.0
        %524 = vmatprep.mubr.f32.mxu0 0.0
        %525 = vmatmul.mubr.f32.gmra.mxu0 %v458
        %v526 = vpop.f32.mrf.mxu0
        %v527 = vadd.f32 0.0, %v526
        %v528 = vpop.f32.mrf.mxu0
        %529 = vdwg.mxu0
        %p530 = scmp.lt.s32.totalorder %s22, 0
        // Predicated region
        $region37: #{tpu_custom_call.1} parent=31 // pred_check
          %p531 = pneg %p530
        $region38: #{tpu_custom_call.1} parent=31 // pred_check_branch
          %533 = sbr.rel (%p531) target = $region40
        $region39: #{tpu_custom_call.1} parent=31 // pred_region
          %v534 = vld [vmem:[#allocation2] sm:$0xff]
          %v535 = vadd.f32 %v534, %v527
          %536 = vst.msk [vmem:[#allocation2] sm:$0xff] %vm237, %v535
        $region40: #{tpu_custom_call.1} parent=31 // pred_fallthru
          _
        // Predicated region
        $region41: #{tpu_custom_call.1} parent=31 // pred_check
          %p537 = pneg %p222
        $region42: #{tpu_custom_call.1} parent=31 // pred_check_branch
          %539 = sbr.rel (%p537) target = $region44
        $region43: #{tpu_custom_call.1} parent=31 // pred_region
          %v540 = vld [vmem:[#allocation2] sm:$0xff]
          %v541 = vadd.f32 %v540, %v527
          %542 = vst.msk [vmem:[%s205] sm:$0xff] %vm237, %v541
        $region44: #{tpu_custom_call.1} parent=31 // pred_fallthru
          _
        %s543 = sand.u32 %s115, 1
        %s544 = scalar_lea.sflag [#allocation4], %s543
        %s545 = sand.u32 %s115, 1
        %s546 = smul.addr %s545, 8
        %s547 = scalar_lea.vmem [#allocation3], %s546
        // Predicated region
        $region45: #{tpu_custom_call.1} parent=31 // pred_check
          %p548 = pneg %p125
        $region46: #{tpu_custom_call.1} parent=31 // pred_check_branch
          %550 = sbr.rel (%p548) target = $region48
        $region47: #{tpu_custom_call.1} parent=31 // pred_region
          %s552 = ssub.s32 128, 128
          %553 = vsyncadd %s544, %s552
          %s554 = smul.addr %s21, 128
          %s555 = scalar_lea.hbm %s3, %s554
          %s557 = sshll.u32 %s547, 4
          %s558 = int_to_ptr.vmem [resolvable:$true] %s557
          %560 = dma.vmem_to_hbm [thread:$0]  %s558, 128, %s555, %s544
        $region48: #{tpu_custom_call.1} parent=31 // pred_fallthru
          _
      $region32: #{tpu_custom_call.1} parent=5 // pred_fallthru
        _
      %p561 = scmp.le.s32.totalorder 2, %s12
      // Predicated region
      $region49: #{tpu_custom_call.1} parent=5 // pred_check
        %p562 = pneg %p561
      $region50: #{tpu_custom_call.1} parent=5 // pred_check_branch
        %564 = sbr.rel (%p562) target = $region52
      $region51: #{tpu_custom_call.1} parent=5 // pred_region
        %s565 = ssub.s32 %s12, 2
        // Predicated region
        $region53: #{tpu_custom_call.1} parent=51 // pred_check
          %p566 = pneg %p131
        $region54: #{tpu_custom_call.1} parent=51 // pred_check_branch
          %568 = sbr.rel (%p566) target = $region56
        $region55: #{tpu_custom_call.1} parent=51 // pred_region
          %s569 = sand.u32 %s116, 1
          %s570 = scalar_lea.sflag [#allocation4], %s569
          %s571 = sand.u32 %s116, 1
          %s572 = smul.addr %s571, 8
          %s573 = scalar_lea.vmem [#allocation3], %s572
          %574 = dma.done %s570, 128
        $region56: #{tpu_custom_call.1} parent=51 // pred_fallthru
          _
      $region52: #{tpu_custom_call.1} parent=5 // pred_fallthru
        _
    $region6: #{tpu_custom_call.1} parent=1 // loop_footer
      %s16 = sadd.s32 1, %s12
    $region7: #{tpu_custom_call.1} parent=1 // loop_footer_branch
      %11 = sbr.rel target = $region3
    $region8: #{tpu_custom_call.1} parent=1 // loop_exit
      _
    %575 = vsyncpa [#allocation4], 1
    %s576 = scalar_lea.sflag [#allocation4], 1
    %577 = vsyncpa %s576, 1

</llo_original>
